<compile_context>
chip_gen: v5e
topology: v5e:2x2
jax: 0.10.0
libtpu: 0.0.40
codegen_flags: <defaults>
</compile_context>

<pallas_src>
import jax
import jax.numpy as jnp
from jax.experimental import pallas as pl
from jax.experimental.pallas import tpu as pltpu


# ----------------------------- Pallas kernel --------------------------------
def mlpnet_kernel(x_ref, pool_ref, w1_ref, w2_ref, w3_ref,
                  wf1t_ref, wf2t_ref, vec_ref, out_ref):
    f32 = jnp.float32

    def relu(v):
        return jnp.maximum(v, 0.0)

    def dot(a, b):
        return jnp.dot(a, b, preferred_element_type=f32)

    x = x_ref[...]          # [ninp, bb*nmax]   features x nodes (lane-dense)
    pool = pool_ref[...]    # [bb*nmax, bb]     block-diagonal mask/count
    vec = vec_ref[...]      # [8, 64]           packed per-feature params

    nout = out_ref.shape[1]
    b1 = vec[0][:, None]
    b2 = vec[1][:, None]
    b3 = vec[2][:, None]
    bn_scale = vec[3][:, None]
    bn_shift = vec[4][:, None]
    bf1 = vec[5, :32][None, :]
    bf2 = vec[6, :nout][None, :]

    # Node-wise MLP: each layer is one [Cout, Cin] @ [Cin, bb*nmax] MXU matmul.
    h = relu(dot(w1_ref[...], x) + b1)            # [64, bb*nmax]
    h = relu(dot(w2_ref[...], h) + b2)            # [64, bb*nmax]
    h = relu(dot(w3_ref[...], h) + b3)            # [64, bb*nmax]

    # global_mean_pool as a single MXU matmul (mask/count baked into `pool`).
    pooled = dot(h, pool)                         # [64, bb]

    # BatchNorm1d (eval mode) folded to per-feature scale/shift.
    pooled = pooled * bn_scale + bn_shift         # [64, bb]

    # MLP head, batch-major (weights pre-transposed in the wrapper).
    pooled_bt = pooled.T                          # [bb, 64]
    z = relu(dot(pooled_bt, wf1t_ref[...]) + bf1)  # [bb, 32]
    z = dot(z, wf2t_ref[...]) + bf2                # [bb, nout]

    # log_softmax over the class axis.
    zmax = jnp.max(z, axis=1, keepdims=True)
    zs = z - zmax
    lse = jnp.log(jnp.sum(jnp.exp(zs), axis=1, keepdims=True))
    out_ref[...] = (zs - lse).astype(out_ref.dtype)   # [bb, nout]


# ------------------------------ wrapper --------------------------------------
def mlpnet_forward(x, mask, params, *, bb=8):
    """x: [B, nmax, ninp] padded node features; mask: [B, nmax] node validity."""
    f32 = jnp.float32
    B, nmax, ninp = x.shape
    assert B % bb == 0, (B, bb)
    nb = B // bb
    nout = params['wf2'].shape[0]
    nodes_blk = bb * nmax

    # Lane-dense layout: features on sublanes, (graph, node) flattened on lanes.
    x_t = jnp.transpose(x.reshape(B * nmax, ninp)).astype(f32)   # [ninp, B*nmax]

    # Block-diagonal mean-pool matrix: pool[g*nmax + i, g % bb] = mask/count.
    cnt = jnp.maximum(jnp.sum(mask, axis=1, keepdims=True), 1.0)
    norm_mask = (mask / cnt).astype(f32)                          # [B, nmax]
    eye = jnp.eye(bb, dtype=f32)
    pool = (norm_mask.reshape(nb, bb, nmax)[:, :, :, None]
            * eye[None, :, None, :]).reshape(B * nmax, bb)        # [B*nmax, bb]

    # Fold BN (eval mode, running stats) into scale/shift.
    # TODO(synk): training-mode BatchNorm1d (batch statistics) is not computed
    # in-kernel; eval-mode running stats are used.
    bn_scale = params['bn_gamma'] / jnp.sqrt(params['bn_var'] + 1e-5)
    bn_shift = params['bn_beta'] - params['bn_mean'] * bn_scale

    def pad64(v):
        return jnp.pad(v, (0, 64 - v.shape[0]))

    vecs = jnp.stack([params['b1'], params['b2'], params['b3'],
                      bn_scale, bn_shift,
                      pad64(params['bf1']), pad64(params['bf2']),
                      jnp.zeros((64,), f32)], axis=0).astype(f32)  # [8, 64]

    w1 = params['w1'].astype(f32)        # [64, ninp]
    w2 = params['w2'].astype(f32)        # [64, 64]
    w3 = params['w3'].astype(f32)        # [64, 64]
    wf1_t = params['wf1'].T.astype(f32)  # [64, 32]
    wf2_t = params['wf2'].T.astype(f32)  # [32, nout]

    in_specs = [
        pl.BlockSpec((ninp, nodes_blk), lambda b: (0, b)),    # x_t
        pl.BlockSpec((nodes_blk, bb), lambda b: (b, 0)),      # pool matrix
        pl.BlockSpec((64, ninp), lambda b: (0, 0)),           # w1
        pl.BlockSpec((64, 64), lambda b: (0, 0)),             # w2
        pl.BlockSpec((64, 64), lambda b: (0, 0)),             # w3
        pl.BlockSpec((64, 32), lambda b: (0, 0)),             # wf1^T
        pl.BlockSpec((32, nout), lambda b: (0, 0)),           # wf2^T
        pl.BlockSpec((8, 64), lambda b: (0, 0)),              # packed vectors
    ]
    out_specs = pl.BlockSpec((bb, nout), lambda b: (b, 0))

    return pl.pallas_call(
        mlpnet_kernel,
        out_shape=jax.ShapeDtypeStruct((B, nout), f32),
        grid_spec=pltpu.PrefetchScalarGridSpec(
            num_scalar_prefetch=0,
            grid=(nb,),
            in_specs=in_specs,
            out_specs=out_specs,
        ),
        compiler_params=pltpu.CompilerParams(
            dimension_semantics=("parallel",)),   # independent batch blocks
    )(x_t, pool, w1, w2, w3, wf1_t, wf2_t, vecs)


# --------------------------- pure-JAX reference -------------------------------
def mlpnet_reference(x, mask, P):
    def relu(v):
        return jnp.maximum(v, 0.0)

    h = relu(jnp.einsum('bnf,of->bno', x, P['w1']) + P['b1'])
    h = relu(jnp.einsum('bnf,of->bno', h, P['w2']) + P['b2'])
    h = relu(jnp.einsum('bnf,of->bno', h, P['w3']) + P['b3'])
    cnt = jnp.maximum(jnp.sum(mask, axis=1, keepdims=True), 1.0)
    pooled = jnp.sum(h * mask[:, :, None], axis=1) / cnt
    pooled = ((pooled - P['bn_mean']) / jnp.sqrt(P['bn_var'] + 1e-5)
              * P['bn_gamma'] + P['bn_beta'])
    z = relu(pooled @ P['wf1'].T + P['bf1'])
    z = z @ P['wf2'].T + P['bf2']
    return jax.nn.log_softmax(z, axis=1)


# ------------------------------- main -----------------------------------------
if __name__ == "__main__":
    # Small shapes consistent with the module (original: nmax=75 nodes/graph,
    # ninp = dataset features, nout = 10 classes, hidden 64, fc1 32).
    B, NMAX, NINP, NOUT = 16, 16, 4, 10

    key = jax.random.PRNGKey(0)
    ks = jax.random.split(key, 18)

    def w(k, shape, fan_in):
        return jax.random.normal(k, shape, jnp.float32) / jnp.sqrt(fan_in)

    params = {
        'w1': w(ks[0], (64, NINP), NINP),  'b1': w(ks[1], (64,), NINP),
        'w2': w(ks[2], (64, 64), 64),      'b2': w(ks[3], (64,), 64),
        'w3': w(ks[4], (64, 64), 64),      'b3': w(ks[5], (64,), 64),
        'bn_gamma': 1.0 + 0.1 * jax.random.normal(ks[6], (64,), jnp.float32),
        'bn_beta': 0.1 * jax.random.normal(ks[7], (64,), jnp.float32),
        'bn_mean': 0.1 * jax.random.normal(ks[8], (64,), jnp.float32),
        'bn_var': jax.random.uniform(ks[9], (64,), jnp.float32, 0.5, 1.5),
        'wf1': w(ks[10], (32, 64), 64),    'bf1': w(ks[11], (32,), 64),
        'wf2': w(ks[12], (NOUT, 32), 32),  'bf2': w(ks[13], (NOUT,), 32),
    }

    # data.x analogue (dense-padded node features) + per-graph node-count mask
    # (data.batch analogue).  edge_index is unused by MlpNet.forward.
    x = jax.random.normal(ks[14], (B, NMAX, NINP), jnp.float32)
    n_valid = jax.random.randint(ks[15], (B,), 4, NMAX + 1)
    mask = (jnp.arange(NMAX)[None, :] < n_valid[:, None]).astype(jnp.float32)

    out = jax.block_until_ready(mlpnet_forward(x, mask, params, bb=8))
    ref = jax.block_until_ready(mlpnet_reference(x, mask, params))

    assert out.shape == (B, NOUT), out.shape
    assert jnp.allclose(out, ref, atol=1e-3, rtol=1e-3), (out, ref)
    print("KERNEL_OK")
</pallas_src>

<mosaic_0001>
module attributes {stable_mosaic.version = 11 : i64} {
  func.func @mlpnet_kernel(%arg0: i32, %arg1: memref<4x128xf32, #tpu.memory_space<vmem>>, %arg2: memref<128x8xf32, #tpu.memory_space<vmem>>, %arg3: memref<64x4xf32, #tpu.memory_space<vmem>>, %arg4: memref<64x64xf32, #tpu.memory_space<vmem>>, %arg5: memref<64x64xf32, #tpu.memory_space<vmem>>, %arg6: memref<64x32xf32, #tpu.memory_space<vmem>>, %arg7: memref<32x10xf32, #tpu.memory_space<vmem>>, %arg8: memref<8x64xf32, #tpu.memory_space<vmem>>, %arg9: memref<8x10xf32, #tpu.memory_space<vmem>>) attributes {dimension_semantics = [#tpu.dimension_semantics<parallel>], iteration_bounds = array<i64: 2>, scalar_prefetch = 0 : i64, scratch_operands = 0 : i64, tpu.core_type = #tpu.core_type<tc>, window_params = [{transform_indices = @transform_0, window_bounds = array<i64: 4, 128>}, {transform_indices = @transform_1, window_bounds = array<i64: 128, 8>}, {pipeline_mode = #tpu.pipeline_mode<synchronous>, transform_indices = @transform_2, window_bounds = array<i64: 64, 4>}, {pipeline_mode = #tpu.pipeline_mode<synchronous>, transform_indices = @transform_3, window_bounds = array<i64: 64, 64>}, {pipeline_mode = #tpu.pipeline_mode<synchronous>, transform_indices = @transform_4, window_bounds = array<i64: 64, 64>}, {pipeline_mode = #tpu.pipeline_mode<synchronous>, transform_indices = @transform_5, window_bounds = array<i64: 64, 32>}, {pipeline_mode = #tpu.pipeline_mode<synchronous>, transform_indices = @transform_6, window_bounds = array<i64: 32, 10>}, {pipeline_mode = #tpu.pipeline_mode<synchronous>, transform_indices = @transform_7, window_bounds = array<i64: 8, 64>}, {transform_indices = @transform_8, window_bounds = array<i64: 8, 10>}]} {
    %c0 = arith.constant 0 : index
    %c0_0 = arith.constant 0 : index
    %0 = vector.load %arg1[%c0, %c0_0] : memref<4x128xf32, #tpu.memory_space<vmem>>, vector<4x128xf32>
    %c0_1 = arith.constant 0 : index
    %c0_2 = arith.constant 0 : index
    %1 = vector.load %arg2[%c0_1, %c0_2] : memref<128x8xf32, #tpu.memory_space<vmem>>, vector<128x8xf32>
    %c0_3 = arith.constant 0 : index
    %c0_4 = arith.constant 0 : index
    %2 = vector.load %arg8[%c0_3, %c0_4] : memref<8x64xf32, #tpu.memory_space<vmem>>, vector<8x64xf32>
    %3 = vector.extract_strided_slice %2 {offsets = [0, 0], sizes = [1, 64], strides = [1, 1]} : vector<8x64xf32> to vector<1x64xf32>
    %4 = vector.shape_cast %3 : vector<1x64xf32> to vector<64xf32>
    %5 = vector.shape_cast %4 : vector<64xf32> to vector<64x1xf32>
    %6 = vector.extract_strided_slice %2 {offsets = [1, 0], sizes = [1, 64], strides = [1, 1]} : vector<8x64xf32> to vector<1x64xf32>
    %7 = vector.shape_cast %6 : vector<1x64xf32> to vector<64xf32>
    %8 = vector.shape_cast %7 : vector<64xf32> to vector<64x1xf32>
    %9 = vector.extract_strided_slice %2 {offsets = [2, 0], sizes = [1, 64], strides = [1, 1]} : vector<8x64xf32> to vector<1x64xf32>
    %10 = vector.shape_cast %9 : vector<1x64xf32> to vector<64xf32>
    %11 = vector.shape_cast %10 : vector<64xf32> to vector<64x1xf32>
    %12 = vector.extract_strided_slice %2 {offsets = [3, 0], sizes = [1, 64], strides = [1, 1]} : vector<8x64xf32> to vector<1x64xf32>
    %13 = vector.shape_cast %12 : vector<1x64xf32> to vector<64xf32>
    %14 = vector.shape_cast %13 : vector<64xf32> to vector<64x1xf32>
    %15 = vector.extract_strided_slice %2 {offsets = [4, 0], sizes = [1, 64], strides = [1, 1]} : vector<8x64xf32> to vector<1x64xf32>
    %16 = vector.shape_cast %15 : vector<1x64xf32> to vector<64xf32>
    %17 = vector.shape_cast %16 : vector<64xf32> to vector<64x1xf32>
    %18 = vector.extract_strided_slice %2 {offsets = [5, 0], sizes = [1, 32], strides = [1, 1]} : vector<8x64xf32> to vector<1x32xf32>
    %19 = vector.shape_cast %18 : vector<1x32xf32> to vector<32xf32>
    %20 = vector.shape_cast %19 : vector<32xf32> to vector<1x32xf32>
    %21 = vector.extract_strided_slice %2 {offsets = [6, 0], sizes = [1, 10], strides = [1, 1]} : vector<8x64xf32> to vector<1x10xf32>
    %22 = vector.shape_cast %21 : vector<1x10xf32> to vector<10xf32>
    %23 = vector.shape_cast %22 : vector<10xf32> to vector<1x10xf32>
    %c0_5 = arith.constant 0 : index
    %c0_6 = arith.constant 0 : index
    %24 = vector.load %arg3[%c0_5, %c0_6] : memref<64x4xf32, #tpu.memory_space<vmem>>, vector<64x4xf32>
    %cst = arith.constant dense<0.000000e+00> : vector<64x128xf32>
    %25 = tpu.matmul %24, %0, %cst {dimension_numbers = #tpu.dot_dimension_numbers<[1], [0], [0], [1], [0, 0, 1, 1], [], []>} : vector<64x4xf32>, vector<4x128xf32>, vector<64x128xf32> -> vector<64x128xf32>
    %26 = vector.broadcast %5 : vector<64x1xf32> to vector<64x128xf32>
    %27 = arith.addf %25, %26 : vector<64x128xf32>
    %cst_7 = arith.constant 0.000000e+00 : f32
    %28 = vector.broadcast %cst_7 : f32 to vector<64x128xf32>
    %29 = arith.maximumf %27, %28 : vector<64x128xf32>
    %c0_8 = arith.constant 0 : index
    %c0_9 = arith.constant 0 : index
    %30 = vector.load %arg4[%c0_8, %c0_9] : memref<64x64xf32, #tpu.memory_space<vmem>>, vector<64x64xf32>
    %cst_10 = arith.constant dense<0.000000e+00> : vector<64x128xf32>
    %31 = tpu.matmul %30, %29, %cst_10 {dimension_numbers = #tpu.dot_dimension_numbers<[1], [0], [0], [1], [0, 0, 1, 1], [], []>} : vector<64x64xf32>, vector<64x128xf32>, vector<64x128xf32> -> vector<64x128xf32>
    %32 = vector.broadcast %8 : vector<64x1xf32> to vector<64x128xf32>
    %33 = arith.addf %31, %32 : vector<64x128xf32>
    %cst_11 = arith.constant 0.000000e+00 : f32
    %34 = vector.broadcast %cst_11 : f32 to vector<64x128xf32>
    %35 = arith.maximumf %33, %34 : vector<64x128xf32>
    %c0_12 = arith.constant 0 : index
    %c0_13 = arith.constant 0 : index
    %36 = vector.load %arg5[%c0_12, %c0_13] : memref<64x64xf32, #tpu.memory_space<vmem>>, vector<64x64xf32>
    %cst_14 = arith.constant dense<0.000000e+00> : vector<64x128xf32>
    %37 = tpu.matmul %36, %35, %cst_14 {dimension_numbers = #tpu.dot_dimension_numbers<[1], [0], [0], [1], [0, 0, 1, 1], [], []>} : vector<64x64xf32>, vector<64x128xf32>, vector<64x128xf32> -> vector<64x128xf32>
    %38 = vector.broadcast %11 : vector<64x1xf32> to vector<64x128xf32>
    %39 = arith.addf %37, %38 : vector<64x128xf32>
    %cst_15 = arith.constant 0.000000e+00 : f32
    %40 = vector.broadcast %cst_15 : f32 to vector<64x128xf32>
    %41 = arith.maximumf %39, %40 : vector<64x128xf32>
    %cst_16 = arith.constant dense<0.000000e+00> : vector<64x8xf32>
    %42 = tpu.matmul %41, %1, %cst_16 {dimension_numbers = #tpu.dot_dimension_numbers<[1], [0], [0], [1], [0, 0, 1, 1], [], []>} : vector<64x128xf32>, vector<128x8xf32>, vector<64x8xf32> -> vector<64x8xf32>
    %43 = vector.broadcast %14 : vector<64x1xf32> to vector<64x8xf32>
    %44 = arith.mulf %42, %43 : vector<64x8xf32>
    %45 = vector.broadcast %17 : vector<64x1xf32> to vector<64x8xf32>
    %46 = arith.addf %44, %45 : vector<64x8xf32>
    %47 = tpu.transpose %46, [1, 0] : vector<64x8xf32> -> vector<8x64xf32>
    %c0_17 = arith.constant 0 : index
    %c0_18 = arith.constant 0 : index
    %48 = vector.load %arg6[%c0_17, %c0_18] : memref<64x32xf32, #tpu.memory_space<vmem>>, vector<64x32xf32>
    %cst_19 = arith.constant dense<0.000000e+00> : vector<8x32xf32>
    %49 = tpu.matmul %47, %48, %cst_19 {dimension_numbers = #tpu.dot_dimension_numbers<[1], [0], [0], [1], [0, 0, 1, 1], [], []>} : vector<8x64xf32>, vector<64x32xf32>, vector<8x32xf32> -> vector<8x32xf32>
    %50 = vector.broadcast %20 : vector<1x32xf32> to vector<8x32xf32>
    %51 = arith.addf %49, %50 : vector<8x32xf32>
    %cst_20 = arith.constant 0.000000e+00 : f32
    %52 = vector.broadcast %cst_20 : f32 to vector<8x32xf32>
    %53 = arith.maximumf %51, %52 : vector<8x32xf32>
    %c0_21 = arith.constant 0 : index
    %c0_22 = arith.constant 0 : index
    %54 = vector.load %arg7[%c0_21, %c0_22] : memref<32x10xf32, #tpu.memory_space<vmem>>, vector<32x10xf32>
    %cst_23 = arith.constant dense<0.000000e+00> : vector<8x10xf32>
    %55 = tpu.matmul %53, %54, %cst_23 {dimension_numbers = #tpu.dot_dimension_numbers<[1], [0], [0], [1], [0, 0, 1, 1], [], []>} : vector<8x32xf32>, vector<32x10xf32>, vector<8x10xf32> -> vector<8x10xf32>
    %56 = vector.broadcast %23 : vector<1x10xf32> to vector<8x10xf32>
    %57 = arith.addf %55, %56 : vector<8x10xf32>
    %cst_24 = arith.constant dense<0xFF800000> : vector<8xf32>
    %58 = vector.multi_reduction <maximumf>, %57, %cst_24 [1] : vector<8x10xf32> to vector<8xf32>
    %59 = vector.shape_cast %58 : vector<8xf32> to vector<8x1xf32>
    %60 = vector.broadcast %59 : vector<8x1xf32> to vector<8x10xf32>
    %61 = arith.subf %57, %60 : vector<8x10xf32>
    %62 = math.exp %61 : vector<8x10xf32>
    %cst_25 = arith.constant dense<0.000000e+00> : vector<8xf32>
    %63 = vector.multi_reduction <add>, %62, %cst_25 [1] : vector<8x10xf32> to vector<8xf32>
    %64 = vector.shape_cast %63 : vector<8xf32> to vector<8x1xf32>
    %65 = math.log %64 : vector<8x1xf32>
    %66 = vector.broadcast %65 : vector<8x1xf32> to vector<8x10xf32>
    %67 = arith.subf %61, %66 : vector<8x10xf32>
    %c0_26 = arith.constant 0 : index
    %c0_27 = arith.constant 0 : index
    %68 = vector.load %arg9[%c0_26, %c0_27] : memref<8x10xf32, #tpu.memory_space<vmem>>, vector<8x10xf32>
    tpu.vector_store %arg9[%c0_26, %c0_27], %67 {strides = array<i32>} : memref<8x10xf32, #tpu.memory_space<vmem>>, vector<8x10xf32>,
    return
  }
  func.func @transform_0(%arg0: i32) -> (i32, i32) {
    %c0_i32 = arith.constant 0 : i32
    %c0_i32_0 = arith.constant 0 : i32
    return %c0_i32, %arg0 : i32, i32
  }
  func.func @transform_1(%arg0: i32) -> (i32, i32) {
    %c0_i32 = arith.constant 0 : i32
    %c0_i32_0 = arith.constant 0 : i32
    return %arg0, %c0_i32 : i32, i32
  }
  func.func @transform_2(%arg0: i32) -> (i32, i32) {
    %c0_i32 = arith.constant 0 : i32
    %c0_i32_0 = arith.constant 0 : i32
    %c0_i32_1 = arith.constant 0 : i32
    return %c0_i32, %c0_i32_0 : i32, i32
  }
  func.func @transform_3(%arg0: i32) -> (i32, i32) {
    %c0_i32 = arith.constant 0 : i32
    %c0_i32_0 = arith.constant 0 : i32
    %c0_i32_1 = arith.constant 0 : i32
    return %c0_i32, %c0_i32_0 : i32, i32
  }
  func.func @transform_4(%arg0: i32) -> (i32, i32) {
    %c0_i32 = arith.constant 0 : i32
    %c0_i32_0 = arith.constant 0 : i32
    %c0_i32_1 = arith.constant 0 : i32
    return %c0_i32, %c0_i32_0 : i32, i32
  }
  func.func @transform_5(%arg0: i32) -> (i32, i32) {
    %c0_i32 = arith.constant 0 : i32
    %c0_i32_0 = arith.constant 0 : i32
    %c0_i32_1 = arith.constant 0 : i32
    return %c0_i32, %c0_i32_0 : i32, i32
  }
  func.func @transform_6(%arg0: i32) -> (i32, i32) {
    %c0_i32 = arith.constant 0 : i32
    %c0_i32_0 = arith.constant 0 : i32
    %c0_i32_1 = arith.constant 0 : i32
    return %c0_i32, %c0_i32_0 : i32, i32
  }
  func.func @transform_7(%arg0: i32) -> (i32, i32) {
    %c0_i32 = arith.constant 0 : i32
    %c0_i32_0 = arith.constant 0 : i32
    %c0_i32_1 = arith.constant 0 : i32
    return %c0_i32, %c0_i32_0 : i32, i32
  }
  func.func @transform_8(%arg0: i32) -> (i32, i32) {
    %c0_i32 = arith.constant 0 : i32
    %c0_i32_0 = arith.constant 0 : i32
    return %arg0, %c0_i32 : i32, i32
  }
}

</mosaic_0001>

<llo_original>
// kernel: tpu_custom_call.1
$region0: #{tpu_custom_call.1}
  #allocation0 [shape = 'u32[]', space=smem, size = 0x4, offset = 0x4, fixed_abs, tag = 'smem constant byte address 0x4 - core index']
  #allocation1 [shape = 'u32[72,128]{1,0:T(1,128)}', space=vmem, size = 0x9000, scoped, tag = 'internal scratch']
  %s0 = inlined_call_operand.vmem [shape: f32[4,256], index: 0, kind: input, shape index: {}]
  %s1 = inlined_call_operand.vmem [shape: f32[256,8], index: 1, kind: input, shape index: {}]
  %s2 = inlined_call_operand.vmem [shape: f32[64,4], index: 2, kind: input, shape index: {}]
  %s3 = inlined_call_operand.vmem [shape: f32[64,64], index: 3, kind: input, shape index: {}]
  %s4 = inlined_call_operand.vmem [shape: f32[64,64], index: 4, kind: input, shape index: {}]
  %s5 = inlined_call_operand.vmem [shape: f32[64,32], index: 5, kind: input, shape index: {}]
  %s6 = inlined_call_operand.vmem [shape: f32[32,10], index: 6, kind: input, shape index: {}]
  %s7 = inlined_call_operand.vmem [shape: f32[8,64], index: 7, kind: input, shape index: {}]
  %s8 = inlined_call_operand.hbm [shape: f32[16,10], index: 8, kind: output, shape index: {}]
  %s9 = sld [smem:[#allocation0]]
  $region65: #{tpu_custom_call.1} parent=0
    _
  %s11 = ssub.s32 1, %s9
  %s12 = scalar_select 0, %s11, %s9
  $region1: #{tpu_custom_call.1} parent=0
    #allocation2 [shape = 'u8[8192]{0}', space=vmem, size = 0x2000, scoped, tag = 'output window, operand 0']
    #allocation3 [shape = 's32[2]{0}', space=sflag, size = 0x8, scoped, tag = 'scoped memory for tpu_custom_call.1']
    %13 = vsyncpa [#allocation3], 0
    %s14 = scalar_lea.sflag [#allocation3], 1
    %15 = vsyncpa %s14, 0
    loop: start=0, step=1, limit=4
    $region2: #{tpu_custom_call.1} parent=1 // loop_pre_header
      _
    $region3: #{tpu_custom_call.1} parent=1 // loop_header
      %s17 = sphi 0, %s21
      %p18 = scmp.ge.s32.totalorder %s17, 4
      %s27 = sphi 0, %s29
      %s30 = sphi 0, %s27
      %s31 = sphi 0, %s30
      %s47 = sphi 0, %s31
      %s53 = sphi 0, %s55
      %s56 = sphi 0, %s53
      %s57 = sphi 0, %s56
      %s73 = sphi 0, %s57
      %s77 = sphi 0, %s77
      %s79 = sphi 0, %s77
      %s80 = sphi 0, %s79
      %s94 = sphi 0, %s80
      %s98 = sphi 0, %s98
      %s100 = sphi 0, %s98
      %s101 = sphi 0, %s100
      %s115 = sphi 0, %s101
      %s119 = sphi 0, %s119
      %s121 = sphi 0, %s119
      %s122 = sphi 0, %s121
      %s136 = sphi 0, %s122
      %s140 = sphi 0, %s140
      %s142 = sphi 0, %s140
      %s143 = sphi 0, %s142
      %s157 = sphi 0, %s143
      %s161 = sphi 0, %s161
      %s163 = sphi 0, %s161
      %s164 = sphi 0, %s163
      %s178 = sphi 0, %s164
      %s182 = sphi 0, %s182
      %s184 = sphi 0, %s182
      %s185 = sphi 0, %s184
      %s199 = sphi 0, %s185
      %s205 = sphi 0, %s207
      %s208 = sphi 0, %s205
      %s209 = sphi 0, %s208
      %s225 = sphi 0, %s209
    $region4: #{tpu_custom_call.1} parent=1 // loop_header_branch
      %20 = sbr.rel (%p18) target = $region8
    $region5: #{tpu_custom_call.1} parent=1 // loop_body
      %s22 = ssub.s32 %s17, 1
      %s23 = ssub.s32 %s17, 2
      %s24 = sadd.s32 %s17, 1
      %s25 = ssub.s32 %s17, %s24
      %p26 = scmp.eq.s32.totalorder %s25, 0
      %s28 = sadd.s32 %s27, 1
      %s29 = scalar_select %p26, %s27, %s28
      %p32 = pneg %p26
      %p33 = scmp.eq.s32.totalorder %s17, 1
      %p34 = por %p32, %p33
      %p35 = scmp.ne.s32.totalorder %s27, %s30
      %p36 = scmp.eq.s32.totalorder %s17, 0
      %p37 = por %p35, %p36
      %p38 = scmp.ne.s32.totalorder %s27, %s30
      %p39 = scmp.eq.s32.totalorder %s22, 1
      %p40 = por %p38, %p39
      %p41 = scmp.ne.s32.totalorder %s30, %s31
      %p42 = scmp.eq.s32.totalorder %s22, 0
      %p43 = por %p41, %p42
      %p44 = scmp.ne.s32.totalorder %s30, %s31
      %p45 = scmp.eq.s32.totalorder %s23, 1
      %p46 = por %p44, %p45
      %p48 = scmp.ne.s32.totalorder %s31, %s47
      %p49 = scmp.eq.s32.totalorder %s23, 0
      %p50 = por %p48, %p49
      %s51 = ssub.s32 %s17, %s24
      %p52 = scmp.eq.s32.totalorder %s51, 0
      %s54 = sadd.s32 %s53, 1
      %s55 = scalar_select %p52, %s53, %s54
      %p58 = pneg %p52
      %p59 = scmp.eq.s32.totalorder %s17, 1
      %p60 = por %p58, %p59
      %p61 = scmp.ne.s32.totalorder %s53, %s56
      %p62 = scmp.eq.s32.totalorder %s17, 0
      %p63 = por %p61, %p62
      %p64 = scmp.ne.s32.totalorder %s53, %s56
      %p65 = scmp.eq.s32.totalorder %s22, 1
      %p66 = por %p64, %p65
      %p67 = scmp.ne.s32.totalorder %s56, %s57
      %p68 = scmp.eq.s32.totalorder %s22, 0
      %p69 = por %p67, %p68
      %p70 = scmp.ne.s32.totalorder %s56, %s57
      %p71 = scmp.eq.s32.totalorder %s23, 1
      %p72 = por %p70, %p71
      %p74 = scmp.ne.s32.totalorder %s57, %s73
      %p75 = scmp.eq.s32.totalorder %s23, 0
      %p76 = por %p74, %p75
      %s78 = sadd.s32 %s77, 1
      %p81 = scmp.eq.s32.totalorder %s17, 1
      %p82 = scmp.ne.s32.totalorder %s77, %s79
      %p83 = scmp.eq.s32.totalorder %s17, 0
      %p84 = por %p82, %p83
      %p85 = scmp.ne.s32.totalorder %s77, %s79
      %p86 = scmp.eq.s32.totalorder %s22, 1
      %p87 = por %p85, %p86
      %p88 = scmp.ne.s32.totalorder %s79, %s80
      %p89 = scmp.eq.s32.totalorder %s22, 0
      %p90 = por %p88, %p89
      %p91 = scmp.ne.s32.totalorder %s79, %s80
      %p92 = scmp.eq.s32.totalorder %s23, 1
      %p93 = por %p91, %p92
      %p95 = scmp.ne.s32.totalorder %s80, %s94
      %p96 = scmp.eq.s32.totalorder %s23, 0
      %p97 = por %p95, %p96
      %s99 = sadd.s32 %s98, 1
      %p102 = scmp.eq.s32.totalorder %s17, 1
      %p103 = scmp.ne.s32.totalorder %s98, %s100
      %p104 = scmp.eq.s32.totalorder %s17, 0
      %p105 = por %p103, %p104
      %p106 = scmp.ne.s32.totalorder %s98, %s100
      %p107 = scmp.eq.s32.totalorder %s22, 1
      %p108 = por %p106, %p107
      %p109 = scmp.ne.s32.totalorder %s100, %s101
      %p110 = scmp.eq.s32.totalorder %s22, 0
      %p111 = por %p109, %p110
      %p112 = scmp.ne.s32.totalorder %s100, %s101
      %p113 = scmp.eq.s32.totalorder %s23, 1
      %p114 = por %p112, %p113
      %p116 = scmp.ne.s32.totalorder %s101, %s115
      %p117 = scmp.eq.s32.totalorder %s23, 0
      %p118 = por %p116, %p117
      %s120 = sadd.s32 %s119, 1
      %p123 = scmp.eq.s32.totalorder %s17, 1
      %p124 = scmp.ne.s32.totalorder %s119, %s121
      %p125 = scmp.eq.s32.totalorder %s17, 0
      %p126 = por %p124, %p125
      %p127 = scmp.ne.s32.totalorder %s119, %s121
      %p128 = scmp.eq.s32.totalorder %s22, 1
      %p129 = por %p127, %p128
      %p130 = scmp.ne.s32.totalorder %s121, %s122
      %p131 = scmp.eq.s32.totalorder %s22, 0
      %p132 = por %p130, %p131
      %p133 = scmp.ne.s32.totalorder %s121, %s122
      %p134 = scmp.eq.s32.totalorder %s23, 1
      %p135 = por %p133, %p134
      %p137 = scmp.ne.s32.totalorder %s122, %s136
      %p138 = scmp.eq.s32.totalorder %s23, 0
      %p139 = por %p137, %p138
      %s141 = sadd.s32 %s140, 1
      %p144 = scmp.eq.s32.totalorder %s17, 1
      %p145 = scmp.ne.s32.totalorder %s140, %s142
      %p146 = scmp.eq.s32.totalorder %s17, 0
      %p147 = por %p145, %p146
      %p148 = scmp.ne.s32.totalorder %s140, %s142
      %p149 = scmp.eq.s32.totalorder %s22, 1
      %p150 = por %p148, %p149
      %p151 = scmp.ne.s32.totalorder %s142, %s143
      %p152 = scmp.eq.s32.totalorder %s22, 0
      %p153 = por %p151, %p152
      %p154 = scmp.ne.s32.totalorder %s142, %s143
      %p155 = scmp.eq.s32.totalorder %s23, 1
      %p156 = por %p154, %p155
      %p158 = scmp.ne.s32.totalorder %s143, %s157
      %p159 = scmp.eq.s32.totalorder %s23, 0
      %p160 = por %p158, %p159
      %s162 = sadd.s32 %s161, 1
      %p165 = scmp.eq.s32.totalorder %s17, 1
      %p166 = scmp.ne.s32.totalorder %s161, %s163
      %p167 = scmp.eq.s32.totalorder %s17, 0
      %p168 = por %p166, %p167
      %p169 = scmp.ne.s32.totalorder %s161, %s163
      %p170 = scmp.eq.s32.totalorder %s22, 1
      %p171 = por %p169, %p170
      %p172 = scmp.ne.s32.totalorder %s163, %s164
      %p173 = scmp.eq.s32.totalorder %s22, 0
      %p174 = por %p172, %p173
      %p175 = scmp.ne.s32.totalorder %s163, %s164
      %p176 = scmp.eq.s32.totalorder %s23, 1
      %p177 = por %p175, %p176
      %p179 = scmp.ne.s32.totalorder %s164, %s178
      %p180 = scmp.eq.s32.totalorder %s23, 0
      %p181 = por %p179, %p180
      %s183 = sadd.s32 %s182, 1
      %p186 = scmp.eq.s32.totalorder %s17, 1
      %p187 = scmp.ne.s32.totalorder %s182, %s184
      %p188 = scmp.eq.s32.totalorder %s17, 0
      %p189 = por %p187, %p188
      %p190 = scmp.ne.s32.totalorder %s182, %s184
      %p191 = scmp.eq.s32.totalorder %s22, 1
      %p192 = por %p190, %p191
      %p193 = scmp.ne.s32.totalorder %s184, %s185
      %p194 = scmp.eq.s32.totalorder %s22, 0
      %p195 = por %p193, %p194
      %p196 = scmp.ne.s32.totalorder %s184, %s185
      %p197 = scmp.eq.s32.totalorder %s23, 1
      %p198 = por %p196, %p197
      %p200 = scmp.ne.s32.totalorder %s185, %s199
      %p201 = scmp.eq.s32.totalorder %s23, 0
      %p202 = por %p200, %p201
      %s203 = ssub.s32 %s17, %s24
      %p204 = scmp.eq.s32.totalorder %s203, 0
      %s206 = sadd.s32 %s205, 1
      %s207 = scalar_select %p204, %s205, %s206
      %p210 = pneg %p204
      %p211 = scmp.eq.s32.totalorder %s17, 1
      %p212 = por %p210, %p211
      %p213 = scmp.ne.s32.totalorder %s205, %s208
      %p214 = scmp.eq.s32.totalorder %s17, 0
      %p215 = por %p213, %p214
      %p216 = scmp.ne.s32.totalorder %s205, %s208
      %p217 = scmp.eq.s32.totalorder %s22, 1
      %p218 = por %p216, %p217
      %p219 = scmp.ne.s32.totalorder %s208, %s209
      %p220 = scmp.eq.s32.totalorder %s22, 0
      %p221 = por %p219, %p220
      %p222 = scmp.ne.s32.totalorder %s208, %s209
      %p223 = scmp.eq.s32.totalorder %s23, 1
      %p224 = por %p222, %p223
      %p226 = scmp.ne.s32.totalorder %s209, %s225
      %p227 = scmp.eq.s32.totalorder %s23, 0
      %p228 = por %p226, %p227
      %p229 = scmp.le.s32.totalorder 1, %s17
      %p230 = scmp.lt.s32.totalorder %s17, 3
      %p231 = pnand %p229, %p230
      %p232 = pneg %p231
      // Predicated region
      $region9: #{tpu_custom_call.1} parent=5 // pred_check
        _
      $region10: #{tpu_custom_call.1} parent=5 // pred_check_branch
        %234 = sbr.rel (%p231) target = $region12
      $region11: #{tpu_custom_call.1} parent=5 // pred_region
        %s235 = ssub.s32 %s17, 1
        // Predicated region
        $region13: #{tpu_custom_call.1} parent=11 // pred_check
          %p236 = pneg %p90
        $region14: #{tpu_custom_call.1} parent=11 // pred_check_branch
          %238 = sbr.rel (%p236) target = $region16
        $region15: #{tpu_custom_call.1} parent=11 // pred_region
          _
        $region16: #{tpu_custom_call.1} parent=11 // pred_fallthru
          _
        // Predicated region
        $region17: #{tpu_custom_call.1} parent=11 // pred_check
          %p239 = pneg %p111
        $region18: #{tpu_custom_call.1} parent=11 // pred_check_branch
          %241 = sbr.rel (%p239) target = $region20
        $region19: #{tpu_custom_call.1} parent=11 // pred_region
          _
        $region20: #{tpu_custom_call.1} parent=11 // pred_fallthru
          _
        // Predicated region
        $region21: #{tpu_custom_call.1} parent=11 // pred_check
          %p242 = pneg %p132
        $region22: #{tpu_custom_call.1} parent=11 // pred_check_branch
          %244 = sbr.rel (%p242) target = $region24
        $region23: #{tpu_custom_call.1} parent=11 // pred_region
          _
        $region24: #{tpu_custom_call.1} parent=11 // pred_fallthru
          _
        // Predicated region
        $region25: #{tpu_custom_call.1} parent=11 // pred_check
          %p245 = pneg %p153
        $region26: #{tpu_custom_call.1} parent=11 // pred_check_branch
          %247 = sbr.rel (%p245) target = $region28
        $region27: #{tpu_custom_call.1} parent=11 // pred_region
          _
        $region28: #{tpu_custom_call.1} parent=11 // pred_fallthru
          _
        // Predicated region
        $region29: #{tpu_custom_call.1} parent=11 // pred_check
          %p248 = pneg %p174
        $region30: #{tpu_custom_call.1} parent=11 // pred_check_branch
          %250 = sbr.rel (%p248) target = $region32
        $region31: #{tpu_custom_call.1} parent=11 // pred_region
          _
        $region32: #{tpu_custom_call.1} parent=11 // pred_fallthru
          _
        // Predicated region
        $region33: #{tpu_custom_call.1} parent=11 // pred_check
          %p251 = pneg %p195
        $region34: #{tpu_custom_call.1} parent=11 // pred_check_branch
          %253 = sbr.rel (%p251) target = $region36
        $region35: #{tpu_custom_call.1} parent=11 // pred_region
          _
        $region36: #{tpu_custom_call.1} parent=11 // pred_fallthru
          _
      $region12: #{tpu_custom_call.1} parent=5 // pred_fallthru
        _
      %p254 = scmp.lt.s32.totalorder %s17, 2
      // Predicated region
      $region37: #{tpu_custom_call.1} parent=5 // pred_check
        %p255 = pneg %p254
      $region38: #{tpu_custom_call.1} parent=5 // pred_check_branch
        %257 = sbr.rel (%p255) target = $region40
      $region39: #{tpu_custom_call.1} parent=5 // pred_region
        // Predicated region
        $region41: #{tpu_custom_call.1} parent=39 // pred_check
          %p258 = pneg %p37
        $region42: #{tpu_custom_call.1} parent=39 // pred_check_branch
          %260 = sbr.rel (%p258) target = $region44
        $region43: #{tpu_custom_call.1} parent=39 // pred_region
          %p261 = scmp.lt.s32.totalorder %s17, 1
          %s262 = scalar_select %p261, %s17, 1
          %s263 = smul.addr %s262, 4
          %s264 = scalar_lea.vmem %s0, %s263
        $region44: #{tpu_custom_call.1} parent=39 // pred_fallthru
          _
        // Predicated region
        $region45: #{tpu_custom_call.1} parent=39 // pred_check
          %p265 = pneg %p63
        $region46: #{tpu_custom_call.1} parent=39 // pred_check_branch
          %267 = sbr.rel (%p265) target = $region48
        $region47: #{tpu_custom_call.1} parent=39 // pred_region
          %s268 = smul.u32 16, %s17
          %p269 = scmp.lt.s32.totalorder %s268, 31
          %s270 = scalar_select %p269, %s268, 31
          %s271 = smul.addr %s270, 8
          %s272 = scalar_lea.vmem %s1, %s271
          %s273 = smul.u32 16, %s17
        $region48: #{tpu_custom_call.1} parent=39 // pred_fallthru
          _
      $region40: #{tpu_custom_call.1} parent=5 // pred_fallthru
        _
      %p274 = scmp.le.s32.totalorder 1, %s17
      %p275 = scmp.lt.s32.totalorder %s17, 3
      %p276 = pnand %p274, %p275
      %p277 = pneg %p276
      // Predicated region
      $region49: #{tpu_custom_call.1} parent=5 // pred_check
        _
      $region50: #{tpu_custom_call.1} parent=5 // pred_check_branch
        %279 = sbr.rel (%p276) target = $region52
      $region51: #{tpu_custom_call.1} parent=5 // pred_region
        %s280 = ssub.s32 %s17, 1
        %p281 = scmp.lt.s32.totalorder %s22, 1
        %s282 = scalar_select %p281, %s22, 1
        %s283 = smul.addr %s282, 4
        %s284 = scalar_lea.vmem %s0, %s283
        %p285 = pneg %p43
        %p286 = pneg %p40
        %s287 = smul.u32 16, %s22
        %p288 = scmp.lt.s32.totalorder %s287, 31
        %s289 = scalar_select %p288, %s287, 31
        %s290 = smul.addr %s289, 8
        %s291 = scalar_lea.vmem %s1, %s290
        %p292 = pneg %p69
        %p293 = pneg %p66
        %p294 = pneg %p90
        %p295 = pneg %p87
        %p296 = pneg %p111
        %p297 = pneg %p108
        %p298 = pneg %p132
        %p299 = pneg %p129
        %p300 = pneg %p153
        %p301 = pneg %p150
        %p302 = pneg %p174
        %p303 = pneg %p171
        %p304 = pneg %p195
        %p305 = pneg %p192
        %p306 = pneg %p221
        %p307 = pneg %p218
        %s308 = sand.u32 %s208, 1
        %s309 = scalar_lea.sflag [#allocation3], %s308
        %s310 = sand.u32 %s208, 1
        %s311 = smul.addr %s310, 8
        %s312 = scalar_lea.vmem [#allocation2], %s311
        %p313 = scmp.lt.s32.totalorder %s22, 1
        %s314 = scalar_select %p313, %s22, 1
        %s315 = smul.addr %s314, 4
        %s316 = scalar_lea.vmem %s0, %s315
        %s317 = smul.u32 16, %s22
        %p318 = scmp.lt.s32.totalorder %s317, 31
        %s319 = scalar_select %p318, %s317, 31
        %s320 = smul.addr %s319, 8
        %s321 = scalar_lea.vmem %s1, %s320
        %s322 = smul.u32 16, %s22
        %v323 = vld [vmem:[%s316] sm:$0xf]
        %v324 = vld [vmem:[%s321] sm:$0xff]
        %v325 = vld [vmem:[%s321 + $0x8] sm:$0xff]
        %v326 = vld [vmem:[%s321 + $0x10] sm:$0xff]
        %v327 = vld [vmem:[%s321 + $0x18] sm:$0xff]
        %v328 = vld [vmem:[%s321 + $0x20] sm:$0xff]
        %v329 = vld [vmem:[%s321 + $0x28] sm:$0xff]
        %v330 = vld [vmem:[%s321 + $0x30] sm:$0xff]
        %v331 = vld [vmem:[%s321 + $0x38] sm:$0xff]
        %v332 = vld [vmem:[%s321 + $0x40] sm:$0xff]
        %v333 = vld [vmem:[%s321 + $0x48] sm:$0xff]
        %v334 = vld [vmem:[%s321 + $0x50] sm:$0xff]
        %v335 = vld [vmem:[%s321 + $0x58] sm:$0xff]
        %v336 = vld [vmem:[%s321 + $0x60] sm:$0xff]
        %v337 = vld [vmem:[%s321 + $0x68] sm:$0xff]
        %v338 = vld [vmem:[%s321 + $0x70] sm:$0xff]
        %v339 = vld [vmem:[%s321 + $0x78] sm:$0xff]
        %v340 = vld [vmem:[%s7] sm:$0xff]
        %v341 = vperm.slane %v340, 0
        %v342 = vlaneseq
        %v343 = vshrl.u32 %v342, 7
        %345 = vset.pattern.permute.xlu0 %v343
        %346 = vperm.xlu0 %345, %v341
        %v347 = vpop.permute.xlu0 %346
        %v348 = vlaneseq
        %v349 = vshrl.u32 %v348, 7
        %v350 = vadd.s32 %v349, 8
        %351 = vset.pattern.permute.xlu0 %v350
        %352 = vperm.xlu0 %351, %v341
        %v353 = vpop.permute.xlu0 %352
        %v354 = vlaneseq
        %v355 = vshrl.u32 %v354, 7
        %v356 = vadd.s32 %v355, 16
        %357 = vset.pattern.permute.xlu0 %v356
        %358 = vperm.xlu0 %357, %v341
        %v359 = vpop.permute.xlu0 %358
        %v360 = vlaneseq
        %v361 = vshrl.u32 %v360, 7
        %v362 = vadd.s32 %v361, 24
        %363 = vset.pattern.permute.xlu0 %v362
        %364 = vperm.xlu0 %363, %v341
        %v365 = vpop.permute.xlu0 %364
        %v366 = vlaneseq
        %v367 = vshrl.u32 %v366, 7
        %v368 = vadd.s32 %v367, 32
        %369 = vset.pattern.permute.xlu0 %v368
        %370 = vperm.xlu0 %369, %v341
        %v371 = vpop.permute.xlu0 %370
        %v372 = vlaneseq
        %v373 = vshrl.u32 %v372, 7
        %v374 = vadd.s32 %v373, 40
        %375 = vset.pattern.permute.xlu0 %v374
        %376 = vperm.xlu0 %375, %v341
        %v377 = vpop.permute.xlu0 %376
        %v378 = vlaneseq
        %v379 = vshrl.u32 %v378, 7
        %v380 = vadd.s32 %v379, 48
        %381 = vset.pattern.permute.xlu0 %v380
        %382 = vperm.xlu0 %381, %v341
        %v383 = vpop.permute.xlu0 %382
        %v384 = vlaneseq
        %v385 = vshrl.u32 %v384, 7
        %v386 = vadd.s32 %v385, 56
        %387 = vset.pattern.permute.xlu0 %v386
        %388 = vperm.xlu0 %387, %v341
        %v389 = vpop.permute.xlu0 %388
        %v390 = vperm.slane %v340, 1
        %v391 = vlaneseq
        %v392 = vshrl.u32 %v391, 7
        %394 = vset.pattern.permute.xlu0 %v392
        %395 = vperm.xlu0 %394, %v390
        %v396 = vpop.permute.xlu0 %395
        %v397 = vlaneseq
        %v398 = vshrl.u32 %v397, 7
        %v399 = vadd.s32 %v398, 8
        %400 = vset.pattern.permute.xlu0 %v399
        %401 = vperm.xlu0 %400, %v390
        %v402 = vpop.permute.xlu0 %401
        %v403 = vlaneseq
        %v404 = vshrl.u32 %v403, 7
        %v405 = vadd.s32 %v404, 16
        %406 = vset.pattern.permute.xlu0 %v405
        %407 = vperm.xlu0 %406, %v390
        %v408 = vpop.permute.xlu0 %407
        %v409 = vlaneseq
        %v410 = vshrl.u32 %v409, 7
        %v411 = vadd.s32 %v410, 24
        %412 = vset.pattern.permute.xlu0 %v411
        %413 = vperm.xlu0 %412, %v390
        %v414 = vpop.permute.xlu0 %413
        %v415 = vlaneseq
        %v416 = vshrl.u32 %v415, 7
        %v417 = vadd.s32 %v416, 32
        %418 = vset.pattern.permute.xlu0 %v417
        %419 = vperm.xlu0 %418, %v390
        %v420 = vpop.permute.xlu0 %419
        %v421 = vlaneseq
        %v422 = vshrl.u32 %v421, 7
        %v423 = vadd.s32 %v422, 40
        %424 = vset.pattern.permute.xlu0 %v423
        %425 = vperm.xlu0 %424, %v390
        %v426 = vpop.permute.xlu0 %425
        %v427 = vlaneseq
        %v428 = vshrl.u32 %v427, 7
        %v429 = vadd.s32 %v428, 48
        %430 = vset.pattern.permute.xlu0 %v429
        %431 = vperm.xlu0 %430, %v390
        %v432 = vpop.permute.xlu0 %431
        %v433 = vlaneseq
        %v434 = vshrl.u32 %v433, 7
        %v435 = vadd.s32 %v434, 56
        %436 = vset.pattern.permute.xlu0 %v435
        %437 = vperm.xlu0 %436, %v390
        %v438 = vpop.permute.xlu0 %437
        %v439 = vperm.slane %v340, 2
        %v440 = vlaneseq
        %v441 = vshrl.u32 %v440, 7
        %443 = vset.pattern.permute.xlu0 %v441
        %444 = vperm.xlu0 %443, %v439
        %v445 = vpop.permute.xlu0 %444
        %v446 = vlaneseq
        %v447 = vshrl.u32 %v446, 7
        %v448 = vadd.s32 %v447, 8
        %449 = vset.pattern.permute.xlu0 %v448
        %450 = vperm.xlu0 %449, %v439
        %v451 = vpop.permute.xlu0 %450
        %v452 = vlaneseq
        %v453 = vshrl.u32 %v452, 7
        %v454 = vadd.s32 %v453, 16
        %455 = vset.pattern.permute.xlu0 %v454
        %456 = vperm.xlu0 %455, %v439
        %v457 = vpop.permute.xlu0 %456
        %v458 = vlaneseq
        %v459 = vshrl.u32 %v458, 7
        %v460 = vadd.s32 %v459, 24
        %461 = vset.pattern.permute.xlu0 %v460
        %462 = vperm.xlu0 %461, %v439
        %v463 = vpop.permute.xlu0 %462
        %v464 = vlaneseq
        %v465 = vshrl.u32 %v464, 7
        %v466 = vadd.s32 %v465, 32
        %467 = vset.pattern.permute.xlu0 %v466
        %468 = vperm.xlu0 %467, %v439
        %v469 = vpop.permute.xlu0 %468
        %v470 = vlaneseq
        %v471 = vshrl.u32 %v470, 7
        %v472 = vadd.s32 %v471, 40
        %473 = vset.pattern.permute.xlu0 %v472
        %474 = vperm.xlu0 %473, %v439
        %v475 = vpop.permute.xlu0 %474
        %v476 = vlaneseq
        %v477 = vshrl.u32 %v476, 7
        %v478 = vadd.s32 %v477, 48
        %479 = vset.pattern.permute.xlu0 %v478
        %480 = vperm.xlu0 %479, %v439
        %v481 = vpop.permute.xlu0 %480
        %v482 = vlaneseq
        %v483 = vshrl.u32 %v482, 7
        %v484 = vadd.s32 %v483, 56
        %485 = vset.pattern.permute.xlu0 %v484
        %486 = vperm.xlu0 %485, %v439
        %v487 = vpop.permute.xlu0 %486
        %v488 = vperm.slane %v340, 3
        %v489 = vlaneseq
        %v490 = vshrl.u32 %v489, 7
        %492 = vset.pattern.permute.xlu0 %v490
        %493 = vperm.xlu0 %492, %v488
        %v494 = vpop.permute.xlu0 %493
        %v495 = vlaneseq
        %v496 = vshrl.u32 %v495, 7
        %v497 = vadd.s32 %v496, 8
        %498 = vset.pattern.permute.xlu0 %v497
        %499 = vperm.xlu0 %498, %v488
        %v500 = vpop.permute.xlu0 %499
        %v501 = vlaneseq
        %v502 = vshrl.u32 %v501, 7
        %v503 = vadd.s32 %v502, 16
        %504 = vset.pattern.permute.xlu0 %v503
        %505 = vperm.xlu0 %504, %v488
        %v506 = vpop.permute.xlu0 %505
        %v507 = vlaneseq
        %v508 = vshrl.u32 %v507, 7
        %v509 = vadd.s32 %v508, 24
        %510 = vset.pattern.permute.xlu0 %v509
        %511 = vperm.xlu0 %510, %v488
        %v512 = vpop.permute.xlu0 %511
        %v513 = vlaneseq
        %v514 = vshrl.u32 %v513, 7
        %v515 = vadd.s32 %v514, 32
        %516 = vset.pattern.permute.xlu0 %v515
        %517 = vperm.xlu0 %516, %v488
        %v518 = vpop.permute.xlu0 %517
        %v519 = vlaneseq
        %v520 = vshrl.u32 %v519, 7
        %v521 = vadd.s32 %v520, 40
        %522 = vset.pattern.permute.xlu0 %v521
        %523 = vperm.xlu0 %522, %v488
        %v524 = vpop.permute.xlu0 %523
        %v525 = vlaneseq
        %v526 = vshrl.u32 %v525, 7
        %v527 = vadd.s32 %v526, 48
        %528 = vset.pattern.permute.xlu0 %v527
        %529 = vperm.xlu0 %528, %v488
        %v530 = vpop.permute.xlu0 %529
        %v531 = vlaneseq
        %v532 = vshrl.u32 %v531, 7
        %v533 = vadd.s32 %v532, 56
        %534 = vset.pattern.permute.xlu0 %v533
        %535 = vperm.xlu0 %534, %v488
        %v536 = vpop.permute.xlu0 %535
        %v537 = vperm.slane %v340, 4
        %v538 = vlaneseq
        %v539 = vshrl.u32 %v538, 7
        %541 = vset.pattern.permute.xlu0 %v539
        %542 = vperm.xlu0 %541, %v537
        %v543 = vpop.permute.xlu0 %542
        %v544 = vlaneseq
        %v545 = vshrl.u32 %v544, 7
        %v546 = vadd.s32 %v545, 8
        %547 = vset.pattern.permute.xlu0 %v546
        %548 = vperm.xlu0 %547, %v537
        %v549 = vpop.permute.xlu0 %548
        %v550 = vlaneseq
        %v551 = vshrl.u32 %v550, 7
        %v552 = vadd.s32 %v551, 16
        %553 = vset.pattern.permute.xlu0 %v552
        %554 = vperm.xlu0 %553, %v537
        %v555 = vpop.permute.xlu0 %554
        %v556 = vlaneseq
        %v557 = vshrl.u32 %v556, 7
        %v558 = vadd.s32 %v557, 24
        %559 = vset.pattern.permute.xlu0 %v558
        %560 = vperm.xlu0 %559, %v537
        %v561 = vpop.permute.xlu0 %560
        %v562 = vlaneseq
        %v563 = vshrl.u32 %v562, 7
        %v564 = vadd.s32 %v563, 32
        %565 = vset.pattern.permute.xlu0 %v564
        %566 = vperm.xlu0 %565, %v537
        %v567 = vpop.permute.xlu0 %566
        %v568 = vlaneseq
        %v569 = vshrl.u32 %v568, 7
        %v570 = vadd.s32 %v569, 40
        %571 = vset.pattern.permute.xlu0 %v570
        %572 = vperm.xlu0 %571, %v537
        %v573 = vpop.permute.xlu0 %572
        %v574 = vlaneseq
        %v575 = vshrl.u32 %v574, 7
        %v576 = vadd.s32 %v575, 48
        %577 = vset.pattern.permute.xlu0 %v576
        %578 = vperm.xlu0 %577, %v537
        %v579 = vpop.permute.xlu0 %578
        %v580 = vlaneseq
        %v581 = vshrl.u32 %v580, 7
        %v582 = vadd.s32 %v581, 56
        %583 = vset.pattern.permute.xlu0 %v582
        %584 = vperm.xlu0 %583, %v537
        %v585 = vpop.permute.xlu0 %584
        %v586 = vld [vmem:[%s2] sm:$0xff]
        %v587 = vld [vmem:[%s2 + $0x8] sm:$0xff]
        %v588 = vld [vmem:[%s2 + $0x10] sm:$0xff]
        %v589 = vld [vmem:[%s2 + $0x18] sm:$0xff]
        %v590 = vld [vmem:[%s2 + $0x20] sm:$0xff]
        %v591 = vld [vmem:[%s2 + $0x28] sm:$0xff]
        %v592 = vld [vmem:[%s2 + $0x30] sm:$0xff]
        %v593 = vld [vmem:[%s2 + $0x38] sm:$0xff]
        %vm594 = vcmask 31744
        %v596 = vsel %vm594, %v586, 0
        %v599 = vsel %vm594, %v587, 0
        %v602 = vsel %vm594, %v588, 0
        %v605 = vsel %vm594, %v589, 0
        %v608 = vsel %vm594, %v590, 0
        %v611 = vsel %vm594, %v591, 0
        %v614 = vsel %vm594, %v592, 0
        %v617 = vsel %vm594, %v593, 0
        %vm619 = vcmask 1043456
        %v621 = vsel %vm619, %v323, 0
        %623 = vmatpush.msra.mxu0 0.0
        %624 = vmatpush.msra.mxu0 0.0
        %625 = vmatpush.msra.mxu0 0.0
        %626 = vmatpush.msra.mxu0 0.0
        %627 = vmatpush.msra.mxu0 0.0
        %628 = vmatpush.msra.mxu0 0.0
        %629 = vmatpush.msra.mxu0 0.0
        %630 = vmatpush.msra.mxu0 0.0
        %631 = vmatpush.msra.mxu0 0.0
        %632 = vmatpush.msra.mxu0 0.0
        %633 = vmatpush.msra.mxu0 0.0
        %634 = vmatpush.msra.mxu0 0.0
        %635 = vmatpush.msra.mxu0 0.0
        %636 = vmatpush.msra.mxu0 0.0
        %637 = vmatpush.msra.mxu0 0.0
        %638 = vmatpush.msra.mxu0 %v621
        %639 = vmatmul.f32.gmra.mxu0 %v596
        %v640 = vpop.f32.mrf.mxu0
        %v641 = vadd.f32 %v347, %v640
        %642 = vmatmul.f32.gmra.mxu0 %v599
        %v643 = vpop.f32.mrf.mxu0
        %v644 = vadd.f32 %v353, %v643
        %645 = vmatmul.f32.gmra.mxu0 %v602
        %v646 = vpop.f32.mrf.mxu0
        %v647 = vadd.f32 %v359, %v646
        %648 = vmatmul.f32.gmra.mxu0 %v605
        %v649 = vpop.f32.mrf.mxu0
        %v650 = vadd.f32 %v365, %v649
        %651 = vmatmul.f32.gmra.mxu0 %v608
        %v652 = vpop.f32.mrf.mxu0
        %v653 = vadd.f32 %v371, %v652
        %654 = vmatmul.f32.gmra.mxu0 %v611
        %v655 = vpop.f32.mrf.mxu0
        %v656 = vadd.f32 %v377, %v655
        %657 = vmatmul.f32.gmra.mxu0 %v614
        %v658 = vpop.f32.mrf.mxu0
        %v659 = vadd.f32 %v383, %v658
        %660 = vmatmul.f32.gmra.mxu0 %v617
        %v661 = vpop.f32.mrf.mxu0
        %v662 = vadd.f32 %v389, %v661
        %663 = vdwg.mxu0
        %v664 = vmax.f32 %v641, 0.0
        %v665 = vmax.f32 %v644, 0.0
        %v666 = vmax.f32 %v647, 0.0
        %v667 = vmax.f32 %v650, 0.0
        %v668 = vmax.f32 %v653, 0.0
        %v669 = vmax.f32 %v656, 0.0
        %v670 = vmax.f32 %v659, 0.0
        %v671 = vmax.f32 %v662, 0.0
        %v672 = vld [vmem:[%s3] sm:$0xff]
        %v673 = vld [vmem:[%s3 + $0x8] sm:$0xff]
        %v674 = vld [vmem:[%s3 + $0x10] sm:$0xff]
        %v675 = vld [vmem:[%s3 + $0x18] sm:$0xff]
        %v676 = vld [vmem:[%s3 + $0x20] sm:$0xff]
        %v677 = vld [vmem:[%s3 + $0x28] sm:$0xff]
        %v678 = vld [vmem:[%s3 + $0x30] sm:$0xff]
        %v679 = vld [vmem:[%s3 + $0x38] sm:$0xff]
        %vm680 = vcmask 523264
        %v682 = vsel %vm680, %v672, 0
        %v685 = vsel %vm680, %v673, 0
        %v688 = vsel %vm680, %v674, 0
        %v691 = vsel %vm680, %v675, 0
        %v694 = vsel %vm680, %v676, 0
        %v697 = vsel %vm680, %v677, 0
        %v700 = vsel %vm680, %v678, 0
        %v703 = vsel %vm680, %v679, 0
        %705 = vmatpush.msra.mxu0 0.0
        %706 = vmatpush.msra.mxu0 0.0
        %707 = vmatpush.msra.mxu0 0.0
        %708 = vmatpush.msra.mxu0 0.0
        %709 = vmatpush.msra.mxu0 0.0
        %710 = vmatpush.msra.mxu0 0.0
        %711 = vmatpush.msra.mxu0 0.0
        %712 = vmatpush.msra.mxu0 0.0
        %713 = vmatpush.msra.mxu0 %v671
        %714 = vmatpush.msra.mxu0 %v670
        %715 = vmatpush.msra.mxu0 %v669
        %716 = vmatpush.msra.mxu0 %v668
        %717 = vmatpush.msra.mxu0 %v667
        %718 = vmatpush.msra.mxu0 %v666
        %719 = vmatpush.msra.mxu0 %v665
        %720 = vmatpush.msra.mxu0 %v664
        %721 = vmatmul.f32.gmra.mxu0 %v682
        %v722 = vpop.f32.mrf.mxu0
        %v723 = vadd.f32 %v396, %v722
        %724 = vmatmul.f32.gmra.mxu0 %v685
        %v725 = vpop.f32.mrf.mxu0
        %v726 = vadd.f32 %v402, %v725
        %727 = vmatmul.f32.gmra.mxu0 %v688
        %v728 = vpop.f32.mrf.mxu0
        %v729 = vadd.f32 %v408, %v728
        %730 = vmatmul.f32.gmra.mxu0 %v691
        %v731 = vpop.f32.mrf.mxu0
        %v732 = vadd.f32 %v414, %v731
        %733 = vmatmul.f32.gmra.mxu0 %v694
        %v734 = vpop.f32.mrf.mxu0
        %v735 = vadd.f32 %v420, %v734
        %736 = vmatmul.f32.gmra.mxu0 %v697
        %v737 = vpop.f32.mrf.mxu0
        %v738 = vadd.f32 %v426, %v737
        %739 = vmatmul.f32.gmra.mxu0 %v700
        %v740 = vpop.f32.mrf.mxu0
        %v741 = vadd.f32 %v432, %v740
        %742 = vmatmul.f32.gmra.mxu0 %v703
        %v743 = vpop.f32.mrf.mxu0
        %v744 = vadd.f32 %v438, %v743
        %745 = vdwg.mxu0
        %v746 = vmax.f32 %v723, 0.0
        %v747 = vmax.f32 %v726, 0.0
        %v748 = vmax.f32 %v729, 0.0
        %v749 = vmax.f32 %v732, 0.0
        %v750 = vmax.f32 %v735, 0.0
        %v751 = vmax.f32 %v738, 0.0
        %v752 = vmax.f32 %v741, 0.0
        %v753 = vmax.f32 %v744, 0.0
        %v754 = vld [vmem:[%s4] sm:$0xff]
        %v755 = vld [vmem:[%s4 + $0x8] sm:$0xff]
        %v756 = vld [vmem:[%s4 + $0x10] sm:$0xff]
        %v757 = vld [vmem:[%s4 + $0x18] sm:$0xff]
        %v758 = vld [vmem:[%s4 + $0x20] sm:$0xff]
        %v759 = vld [vmem:[%s4 + $0x28] sm:$0xff]
        %v760 = vld [vmem:[%s4 + $0x30] sm:$0xff]
        %v761 = vld [vmem:[%s4 + $0x38] sm:$0xff]
        %v763 = vsel %vm680, %v754, 0
        %v766 = vsel %vm680, %v755, 0
        %v769 = vsel %vm680, %v756, 0
        %v772 = vsel %vm680, %v757, 0
        %v775 = vsel %vm680, %v758, 0
        %v778 = vsel %vm680, %v759, 0
        %v781 = vsel %vm680, %v760, 0
        %v784 = vsel %vm680, %v761, 0
        %786 = vmatpush.msra.mxu0 0.0
        %787 = vmatpush.msra.mxu0 0.0
        %788 = vmatpush.msra.mxu0 0.0
        %789 = vmatpush.msra.mxu0 0.0
        %790 = vmatpush.msra.mxu0 0.0
        %791 = vmatpush.msra.mxu0 0.0
        %792 = vmatpush.msra.mxu0 0.0
        %793 = vmatpush.msra.mxu0 0.0
        %794 = vmatpush.msra.mxu0 %v753
        %795 = vmatpush.msra.mxu0 %v752
        %796 = vmatpush.msra.mxu0 %v751
        %797 = vmatpush.msra.mxu0 %v750
        %798 = vmatpush.msra.mxu0 %v749
        %799 = vmatpush.msra.mxu0 %v748
        %800 = vmatpush.msra.mxu0 %v747
        %801 = vmatpush.msra.mxu0 %v746
        %802 = vmatmul.f32.gmra.mxu0 %v763
        %v803 = vpop.f32.mrf.mxu0
        %v804 = vadd.f32 %v445, %v803
        %805 = vmatmul.f32.gmra.mxu0 %v766
        %v806 = vpop.f32.mrf.mxu0
        %v807 = vadd.f32 %v451, %v806
        %808 = vmatmul.f32.gmra.mxu0 %v769
        %v809 = vpop.f32.mrf.mxu0
        %v810 = vadd.f32 %v457, %v809
        %811 = vmatmul.f32.gmra.mxu0 %v772
        %v812 = vpop.f32.mrf.mxu0
        %v813 = vadd.f32 %v463, %v812
        %814 = vmatmul.f32.gmra.mxu0 %v775
        %v815 = vpop.f32.mrf.mxu0
        %v816 = vadd.f32 %v469, %v815
        %817 = vmatmul.f32.gmra.mxu0 %v778
        %v818 = vpop.f32.mrf.mxu0
        %v819 = vadd.f32 %v475, %v818
        %820 = vmatmul.f32.gmra.mxu0 %v781
        %v821 = vpop.f32.mrf.mxu0
        %v822 = vadd.f32 %v481, %v821
        %823 = vmatmul.f32.gmra.mxu0 %v784
        %v824 = vpop.f32.mrf.mxu0
        %v825 = vadd.f32 %v487, %v824
        %826 = vdwg.mxu0
        %v827 = vmax.f32 %v804, 0.0
        %v828 = vmax.f32 %v807, 0.0
        %v829 = vmax.f32 %v810, 0.0
        %v830 = vmax.f32 %v813, 0.0
        %v831 = vmax.f32 %v816, 0.0
        %v832 = vmax.f32 %v819, 0.0
        %v833 = vmax.f32 %v822, 0.0
        %v834 = vmax.f32 %v825, 0.0
        %835 = vmatpush.msra.mxu0 %v339
        %836 = vmatpush.msra.mxu0 %v338
        %837 = vmatpush.msra.mxu0 %v337
        %838 = vmatpush.msra.mxu0 %v336
        %839 = vmatpush.msra.mxu0 %v335
        %840 = vmatpush.msra.mxu0 %v334
        %841 = vmatpush.msra.mxu0 %v333
        %842 = vmatpush.msra.mxu0 %v332
        %843 = vmatpush.msra.mxu0 %v331
        %844 = vmatpush.msra.mxu0 %v330
        %845 = vmatpush.msra.mxu0 %v329
        %846 = vmatpush.msra.mxu0 %v328
        %847 = vmatpush.msra.mxu0 %v327
        %848 = vmatpush.msra.mxu0 %v326
        %849 = vmatpush.msra.mxu0 %v325
        %850 = vmatpush.msra.mxu0 %v324
        %851 = vmatmul.f32.gmra.mxu0 %v827
        %v852 = vpop.f32.mrf.mxu0
        %v853 = vadd.f32 0.0, %v852
        %854 = vmatmul.f32.gmra.mxu0 %v828
        %v855 = vpop.f32.mrf.mxu0
        %v856 = vadd.f32 0.0, %v855
        %857 = vmatmul.f32.gmra.mxu0 %v829
        %v858 = vpop.f32.mrf.mxu0
        %v859 = vadd.f32 0.0, %v858
        %860 = vmatmul.f32.gmra.mxu0 %v830
        %v861 = vpop.f32.mrf.mxu0
        %v862 = vadd.f32 0.0, %v861
        %863 = vmatmul.f32.gmra.mxu0 %v831
        %v864 = vpop.f32.mrf.mxu0
        %v865 = vadd.f32 0.0, %v864
        %866 = vmatmul.f32.gmra.mxu0 %v832
        %v867 = vpop.f32.mrf.mxu0
        %v868 = vadd.f32 0.0, %v867
        %869 = vmatmul.f32.gmra.mxu0 %v833
        %v870 = vpop.f32.mrf.mxu0
        %v871 = vadd.f32 0.0, %v870
        %872 = vmatmul.f32.gmra.mxu0 %v834
        %v873 = vpop.f32.mrf.mxu0
        %v874 = vadd.f32 0.0, %v873
        %875 = vdwg.mxu0
        %v876 = vmul.f32 %v853, %v494
        %v877 = vmul.f32 %v856, %v500
        %v878 = vmul.f32 %v859, %v506
        %v879 = vmul.f32 %v862, %v512
        %v880 = vmul.f32 %v865, %v518
        %v881 = vmul.f32 %v868, %v524
        %v882 = vmul.f32 %v871, %v530
        %v883 = vmul.f32 %v874, %v536
        %v884 = vadd.f32 %v876, %v543
        %v885 = vadd.f32 %v877, %v549
        %v886 = vadd.f32 %v878, %v555
        %v887 = vadd.f32 %v879, %v561
        %v888 = vadd.f32 %v880, %v567
        %v889 = vadd.f32 %v881, %v573
        %v890 = vadd.f32 %v882, %v579
        %v891 = vadd.f32 %v883, %v585
        %892 = vxpose.xlu0.b32.start [1/16] %v884, 128
        %893 = vxpose.xlu0.b32.cont [2/16] %v885, 128
        %894 = vxpose.xlu0.b32.cont [3/16] %v886, 128
        %895 = vxpose.xlu0.b32.cont [4/16] %v887, 128
        %896 = vxpose.xlu0.b32.cont [5/16] %v888, 128
        %897 = vxpose.xlu0.b32.cont [6/16] %v889, 128
        %898 = vxpose.xlu0.b32.cont [7/16] %v890, 128
        %899 = vxpose.xlu0.b32.cont [8/16] %v891, 128
        %900 = vxpose.xlu0.b32.cont [9/16] 0.0, 128
        %901 = vxpose.xlu0.b32.cont [10/16] 0.0, 128
        %902 = vxpose.xlu0.b32.cont [11/16] 0.0, 128
        %903 = vxpose.xlu0.b32.cont [12/16] 0.0, 128
        %904 = vxpose.xlu0.b32.cont [13/16] 0.0, 128
        %905 = vxpose.xlu0.b32.cont [14/16] 0.0, 128
        %906 = vxpose.xlu0.b32.cont [15/16] 0.0, 128
        %907 = vxpose.xlu0.b32.end [16/16] 0.0, 128
        %v908 = vpop.trf.xlu0
        %v909 = vpop.trf.xlu0
        %v910 = vpop.trf.xlu0
        %v911 = vpop.trf.xlu0
        %v912 = vpop.trf.xlu0
        %v913 = vpop.trf.xlu0
        %v914 = vpop.trf.xlu0
        %v915 = vpop.trf.xlu0
        %v916 = vpop.trf.xlu0
        %v917 = vpop.trf.xlu0
        %v918 = vpop.trf.xlu0
        %v919 = vpop.trf.xlu0
        %v920 = vpop.trf.xlu0
        %v921 = vpop.trf.xlu0
        %v922 = vpop.trf.xlu0
        %v923 = vpop.trf.xlu0
        %v924 = vld [vmem:[%s5] sm:$0xff]
        %v925 = vld [vmem:[%s5 + $0x8] sm:$0xff]
        %v926 = vld [vmem:[%s5 + $0x10] sm:$0xff]
        %v927 = vld [vmem:[%s5 + $0x18] sm:$0xff]
        %v928 = vld [vmem:[%s5 + $0x20] sm:$0xff]
        %v929 = vld [vmem:[%s5 + $0x28] sm:$0xff]
        %v930 = vld [vmem:[%s5 + $0x30] sm:$0xff]
        %v931 = vld [vmem:[%s5 + $0x38] sm:$0xff]
        %v932 = vperm.slane %v340, 5
        %v934 = vsel %vm680, %v908, 0
        %936 = vmatpush.msra.mxu0 0.0
        %937 = vmatpush.msra.mxu0 0.0
        %938 = vmatpush.msra.mxu0 0.0
        %939 = vmatpush.msra.mxu0 0.0
        %940 = vmatpush.msra.mxu0 0.0
        %941 = vmatpush.msra.mxu0 0.0
        %942 = vmatpush.msra.mxu0 0.0
        %943 = vmatpush.msra.mxu0 0.0
        %944 = vmatpush.msra.mxu0 %v931
        %945 = vmatpush.msra.mxu0 %v930
        %946 = vmatpush.msra.mxu0 %v929
        %947 = vmatpush.msra.mxu0 %v928
        %948 = vmatpush.msra.mxu0 %v927
        %949 = vmatpush.msra.mxu0 %v926
        %950 = vmatpush.msra.mxu0 %v925
        %951 = vmatpush.msra.mxu0 %v924
        %952 = vmatmul.f32.gmra.mxu0 %v934
        %v953 = vpop.f32.mrf.mxu0
        %v954 = vadd.f32 %v932, %v953
        %955 = vdwg.mxu0
        %v956 = vmax.f32 %v954, 0.0
        %v957 = vld [vmem:[%s6] sm:$0xff]
        %v958 = vld [vmem:[%s6 + $0x8] sm:$0xff]
        %v959 = vld [vmem:[%s6 + $0x10] sm:$0xff]
        %v960 = vld [vmem:[%s6 + $0x18] sm:$0xff]
        %v961 = vperm.slane %v340, 6
        %vm962 = vcmask 261120
        %v964 = vsel %vm962, %v956, 0
        %966 = vmatpush.msra.mxu0 0.0
        %967 = vmatpush.msra.mxu0 0.0
        %968 = vmatpush.msra.mxu0 0.0
        %969 = vmatpush.msra.mxu0 0.0
        %970 = vmatpush.msra.mxu0 0.0
        %971 = vmatpush.msra.mxu0 0.0
        %972 = vmatpush.msra.mxu0 0.0
        %973 = vmatpush.msra.mxu0 0.0
        %974 = vmatpush.msra.mxu0 0.0
        %975 = vmatpush.msra.mxu0 0.0
        %976 = vmatpush.msra.mxu0 0.0
        %977 = vmatpush.msra.mxu0 0.0
        %978 = vmatpush.msra.mxu0 %v960
        %979 = vmatpush.msra.mxu0 %v959
        %980 = vmatpush.msra.mxu0 %v958
        %981 = vmatpush.msra.mxu0 %v957
        %982 = vmatmul.f32.gmra.mxu0 %v964
        %v983 = vpop.f32.mrf.mxu0
        %v984 = vadd.f32 %v961, %v983
        %985 = vdwg.mxu0
        %vm986 = vcmask 80896
        %v987 = vsel %vm986, %v984, -inf
        %988 = vmax.xlane.f32.xlu0 %v987
        %v989 = vpop.xlane.xlu0 %988
        %v990 = vsub.f32 %v984, %v989
        %v991 = vmul.f32 %v990, 1.442695
        %v992 = vpow.pop %v991
        %v993 = vsel %vm986, %v992, 0.0
        %994 = vadd.xlane.f32.xlu0 %v993
        %v995 = vpop.xlane.xlu0 %994
        %v996 = vlog2.pop %v995
        %v997 = vmul.f32 %v996, 0.6931472
        %v998 = vsub.f32 %v990, %v997
        %999 = vst.msk [vmem:[%s312] sm:$0xff] %vm986, %v998
        %s1000 = sand.u32 %s208, 1
        %s1001 = scalar_lea.sflag [#allocation3], %s1000
        %s1002 = sand.u32 %s208, 1
        %s1003 = smul.addr %s1002, 8
        %s1004 = scalar_lea.vmem [#allocation2], %s1003
        // Predicated region
        $region53: #{tpu_custom_call.1} parent=51 // pred_check
          %p1005 = pneg %p218
        $region54: #{tpu_custom_call.1} parent=51 // pred_check_branch
          %1007 = sbr.rel (%p1005) target = $region56
        $region55: #{tpu_custom_call.1} parent=51 // pred_region
          %1009 = vsyncadd %s1001, 0
          %s1010 = smul.addr %s22, 8
          %s1011 = scalar_lea.hbm %s8, %s1010
          %s1013 = sshll.u32 %s1004, 4
          %s1014 = int_to_ptr.vmem [resolvable:$true] %s1013
          %s1015 = sshll.u32 %s1011, 4
          %s1016 = int_to_ptr.hbm [resolvable:$true] %s1015
          %1018 = dma.vmem_to_hbm [thread:$0]  %s1014, 128, %s1016, %s1001
        $region56: #{tpu_custom_call.1} parent=51 // pred_fallthru
          _
      $region52: #{tpu_custom_call.1} parent=5 // pred_fallthru
        _
      %p1019 = scmp.le.s32.totalorder 2, %s17
      // Predicated region
      $region57: #{tpu_custom_call.1} parent=5 // pred_check
        %p1020 = pneg %p1019
      $region58: #{tpu_custom_call.1} parent=5 // pred_check_branch
        %1022 = sbr.rel (%p1020) target = $region60
      $region59: #{tpu_custom_call.1} parent=5 // pred_region
        %s1023 = ssub.s32 %s17, 2
        // Predicated region
        $region61: #{tpu_custom_call.1} parent=59 // pred_check
          %p1024 = pneg %p224
        $region62: #{tpu_custom_call.1} parent=59 // pred_check_branch
          %1026 = sbr.rel (%p1024) target = $region64
        $region63: #{tpu_custom_call.1} parent=59 // pred_region
          %s1027 = sand.u32 %s209, 1
          %s1028 = scalar_lea.sflag [#allocation3], %s1027
          %s1029 = sand.u32 %s209, 1
          %s1030 = smul.addr %s1029, 8
          %s1031 = scalar_lea.vmem [#allocation2], %s1030
          %1033 = dma.done %s1028, 128
        $region64: #{tpu_custom_call.1} parent=59 // pred_fallthru
          _
      $region60: #{tpu_custom_call.1} parent=5 // pred_fallthru
        _
    $region6: #{tpu_custom_call.1} parent=1 // loop_footer
      %s21 = sadd.s32 1, %s17
    $region7: #{tpu_custom_call.1} parent=1 // loop_footer_branch
      %16 = sbr.rel target = $region3
    $region8: #{tpu_custom_call.1} parent=1 // loop_exit
      _
    %1034 = vsyncpa [#allocation3], 1
    %s1035 = scalar_lea.sflag [#allocation3], 1
    %1036 = vsyncpa %s1035, 1

</llo_original>
